<compile_context>
chip_gen: v7x
topology: tpu7x:2x2x1
jax: 0.10.0
libtpu: 0.0.40
codegen_flags: <defaults>
</compile_context>

<pallas_src>
import jax
import jax.numpy as jnp
from jax.experimental import pallas as pl
from jax.experimental.pallas import tpu as pltpu


def _round_up(x, m):
    return (x + m - 1) // m * m


def _cdiv(a, b):
    return (a + b - 1) // b


# --------------------------------------------------------------------------
# Kernels
# --------------------------------------------------------------------------
def _ffn_kernel_single(x_ref, w1_ref, b1_ref, w2_ref, b2_ref, o_ref):
    """Whole d_ff resident: 1-D grid over rows; weights fetched once per call."""
    # Cast the x tile in VMEM (no wrapper-side astype / extra HBM round trip).
    x = x_ref[...].astype(w1_ref.dtype)
    h = jnp.dot(x, w1_ref[...], preferred_element_type=jnp.float32)
    h = jnp.maximum(h + b1_ref[...], 0.0)
    # TODO(synk): training-mode dropout would build a keep-mask here with
    # pltpu.prng_seed + pltpu.prng_random_bits; inference dropout is identity.
    out = jnp.dot(h.astype(w2_ref.dtype), w2_ref[...],
                  preferred_element_type=jnp.float32)
    o_ref[...] = (out + b2_ref[...]).astype(o_ref.dtype)


def _ffn_kernel_ktiled(x_ref, w1_ref, b1_ref, w2_ref, b2_ref, o_ref, acc_ref):
    """d_ff streamed in block_k slices; f32 accumulator over the k grid axis."""
    k = pl.program_id(1)

    @pl.when(k == 0)
    def _():
        acc_ref[...] = jnp.zeros_like(acc_ref)

    x = x_ref[...].astype(w1_ref.dtype)
    h = jnp.dot(x, w1_ref[...], preferred_element_type=jnp.float32)
    h = jnp.maximum(h + b1_ref[...], 0.0)
    # TODO(synk): training-mode dropout mask would be applied to `h` here.
    acc_ref[...] += jnp.dot(h.astype(w2_ref.dtype), w2_ref[...],
                            preferred_element_type=jnp.float32)

    @pl.when(k == pl.num_programs(1) - 1)
    def _():
        o_ref[...] = (acc_ref[...] + b2_ref[...]).astype(o_ref.dtype)


# --------------------------------------------------------------------------
# Wrapper
# --------------------------------------------------------------------------
def _vmem_capacity_bytes():
    try:
        info = pltpu.get_tpu_info()
        return int(getattr(info, "vmem_capacity_bytes", 64 * 1024 * 1024))
    except Exception:
        return 64 * 1024 * 1024  # conservative (v7x per-TC)


def positionwise_feed_forward(x, w1, b1, w2, b2, *,
                              block_m=None, block_k=None,
                              mxu_dtype=jnp.bfloat16,
                              weight_buffers=None,
                              vmem_limit_bytes=None):
    """x: [B, S, d_model]; w1: [d_model, d_ff]; w2: [d_ff, d_model].

    Returns (out [B, S, d_model], None), matching the PyTorch module.
    Weights are pre-transposed vs. torch.nn.Linear's (out, in) storage.
    """
    B, S, d_model = x.shape
    d_ff = w1.shape[1]
    out_dtype = x.dtype
    M = B * S

    x_bytes = jnp.dtype(x.dtype).itemsize
    out_bytes = jnp.dtype(out_dtype).itemsize
    mxu_bytes = jnp.dtype(mxu_dtype).itemsize

    vmem_cap = _vmem_capacity_bytes()
    budget = int(vmem_cap * 0.75)  # headroom for compiler temporaries

    def footprint(bm, bk, num_k):
        f = 2 * bm * d_model * x_bytes          # x tiles (double-buffered)
        f += 2 * bm * d_model * out_bytes       # out tiles
        f += 2 * d_model * bk * mxu_bytes       # w1 tiles
        f += 2 * bk * d_model * mxu_bytes       # w2 tiles
        f += 2 * (bk + d_model) * 4             # biases (f32)
        f += bm * bk * 4                        # h intermediate (f32)
        f += 2 * bm * bk * mxu_bytes            # h cast for 2nd matmul + slack
        if num_k > 1:
            f += bm * d_model * 4               # accumulator scratch
        return f

    # ---- row tile (no padding of M; partial last tile is masked) ----------
    if block_m is None:
        bm = min(512, _round_up(M, 8))
        # Keep >= 2 row tiles when there is enough work (v7x has 2 TCs).
        if M >= 256 and _cdiv(M, bm) < 2:
            bm = max(128, _round_up(_cdiv(M, 2), 8))
    else:
        bm = max(8, _round_up(min(block_m, _round_up(M, 8)), 8))

    # ---- d_ff tile: prefer whole-d_ff residency (weights DMA'd once) ------
    if block_k is None:
        bk = d_ff
        while footprint(bm, bk, 1) > budget and bm > 128:
            bm = max(128, _round_up(bm // 2, 8))
        if footprint(bm, bk, 1) > budget:
            # Weights too big for VMEM even at bm=128: stream them in slices.
            bk = min(512, _round_up(d_ff, 128))
            while footprint(bm, bk, 2) > budget and bk > 128:
                bk //= 2
            while footprint(bm, bk, 2) > budget and bm > 8:
                bm = max(8, _round_up(bm // 2, 8))
    else:
        bk = block_k
        if bk >= d_ff:
            bk = d_ff
        else:
            assert bk % 128 == 0, "block_k must be d_ff or a multiple of 128"

    if bk == d_ff:
        d_ff_pad, num_k = d_ff, 1
    else:
        d_ff_pad = _round_up(d_ff, bk)
        num_k = d_ff_pad // bk

    grid_m = _cdiv(M, bm)

    # ---- parameters (a real caller would pre-cast & cache these; astype is
    # a no-op when they are already in mxu_dtype) ---------------------------
    w1c = w1.astype(mxu_dtype)
    w2c = w2.astype(mxu_dtype)
    b1_2d = b1.reshape(1, d_ff).astype(jnp.float32)
    b2_2d = b2.reshape(1, d_model).astype(jnp.float32)
    if d_ff_pad != d_ff:
        # Zero padding is exact: relu(0 + 0) = 0 contributes nothing through
        # the zero-padded rows of w2.  Parameter-sized, cacheable by caller.
        w1c = jnp.pad(w1c, ((0, 0), (0, d_ff_pad - d_ff)))
        b1_2d = jnp.pad(b1_2d, ((0, 0), (0, d_ff_pad - d_ff)))
        w2c = jnp.pad(w2c, ((0, d_ff_pad - d_ff), (0, 0)))

    # x: only a (free) reshape — no cast, no pad.
    x2d = x.reshape(M, d_model)

    if vmem_limit_bytes is None:
        vmem_limit_bytes = min(int(vmem_cap * 0.9),
                               max(2 * footprint(bm, bk, num_k),
                                   48 * 1024 * 1024))

    cost = pl.CostEstimate(
        flops=4 * M * d_model * d_ff,           # two matmuls, 2 flops/MAC
        transcendentals=0,
        bytes_accessed=(M * d_model * (x_bytes + out_bytes)
                        + 2 * d_model * d_ff * mxu_bytes
                        + (d_ff + d_model) * 4),
    )

    if num_k == 1:
        # Single-k specialization: no accumulator scratch, weights' block
        # indices are constant -> fetched once for the whole call.
        grid = (grid_m,)
        in_specs = [
            pl.BlockSpec((bm, d_model), lambda i: (i, 0)),        # x rows
            pl.BlockSpec((d_model, d_ff), lambda i: (0, 0)),      # w1 (resident)
            pl.BlockSpec((1, d_ff), lambda i: (0, 0)),            # b1
            pl.BlockSpec((d_ff, d_model), lambda i: (0, 0)),      # w2 (resident)
            pl.BlockSpec((1, d_model), lambda i: (0, 0)),         # b2
        ]
        out_specs = pl.BlockSpec((bm, d_model), lambda i: (i, 0))
        kernel = _ffn_kernel_single
        scratch_shapes = []
        dim_sem = ("parallel",)
    else:
        def _wspec(shape, idx):
            if weight_buffers is not None:
                return pl.BlockSpec(shape, idx,
                                    pipeline_mode=pl.Buffered(weight_buffers))
            return pl.BlockSpec(shape, idx)

        grid = (grid_m, num_k)
        in_specs = [
            pl.BlockSpec((bm, d_model), lambda i, k: (i, 0)),     # x rows
            _wspec((d_model, bk), lambda i, k: (0, k)),           # w1 slice
            pl.BlockSpec((1, bk), lambda i, k: (0, k)),           # b1 slice
            _wspec((bk, d_model), lambda i, k: (k, 0)),           # w2 slice
            pl.BlockSpec((1, d_model), lambda i, k: (0, 0)),      # b2
        ]
        out_specs = pl.BlockSpec((bm, d_model), lambda i, k: (i, 0))
        kernel = _ffn_kernel_ktiled
        scratch_shapes = [pltpu.VMEM((bm, d_model), jnp.float32)]
        dim_sem = ("parallel", "arbitrary")

    out2d = pl.pallas_call(
        kernel,
        out_shape=jax.ShapeDtypeStruct((M, d_model), out_dtype),
        grid_spec=pltpu.PrefetchScalarGridSpec(
            num_scalar_prefetch=0,
            grid=grid,
            in_specs=in_specs,
            out_specs=out_specs,
            scratch_shapes=scratch_shapes,
        ),
        compiler_params=pltpu.CompilerParams(
            dimension_semantics=dim_sem,
            vmem_limit_bytes=int(vmem_limit_bytes),
        ),
        cost_estimate=cost,
    )(x2d, w1c, b1_2d, w2c, b2_2d)

    return out2d.reshape(B, S, d_model), None


if __name__ == "__main__":
    # Small shapes consistent with the module: batch=2, seq=8, d_model=32,
    # d_ff=256 (so the d_ff grid axis can be exercised when forced).
    B, S, d_model, d_ff = 2, 8, 32, 256

    key = jax.random.PRNGKey(0)
    kx, kw1, kb1, kw2, kb2 = jax.random.split(key, 5)

    x = jax.random.normal(kx, (B, S, d_model), dtype=jnp.float32)
    # PyTorch Linear stores (out, in) and computes x @ W.T + b; weights here
    # are stored pre-transposed as (in, out).
    w1 = jax.random.normal(kw1, (d_model, d_ff), dtype=jnp.float32) * 0.1
    b1 = jax.random.normal(kb1, (d_ff,), dtype=jnp.float32) * 0.1
    w2 = jax.random.normal(kw2, (d_ff, d_model), dtype=jnp.float32) * 0.1
    b2 = jax.random.normal(kb2, (d_model,), dtype=jnp.float32) * 0.1

    ref = jnp.maximum(x @ w1 + b1, 0.0) @ w2 + b2

    # 1) Default path: bf16 MXU, whole d_ff resident, single-k kernel.
    #    Weights pre-cast once (a real caller would cache these), so the
    #    wrapper's astype is a no-op.
    w1_bf16 = w1.astype(jnp.bfloat16)
    w2_bf16 = w2.astype(jnp.bfloat16)
    out, none_val = positionwise_feed_forward(x, w1_bf16, b1, w2_bf16, b2)
    out = jax.block_until_ready(out)
    assert none_val is None
    assert out.shape == (B, S, d_model) and out.dtype == x.dtype
    assert jnp.allclose(out, ref, atol=3e-2, rtol=3e-2), "bf16 default path mismatch"

    # 2) f32 MXU path with forced row + d_ff tiling (exercises the k-tiled
    #    accumulator kernel and multiple M tiles) -> tight check.
    out32, _ = positionwise_feed_forward(x, w1, b1, w2, b2,
                                         mxu_dtype=jnp.float32,
                                         block_m=8, block_k=128)
    out32 = jax.block_until_ready(out32)
    assert jnp.allclose(out32, ref, atol=1e-4, rtol=1e-4), "f32 k-tiled mismatch"

    # 3) Row count not a multiple of 8: no wrapper pad of x or slice of out;
    #    Pallas masks the partial last row tile.
    x_odd = x[:, :7, :]
    ref_odd = jnp.maximum(x_odd @ w1 + b1, 0.0) @ w2 + b2
    out_odd, _ = positionwise_feed_forward(x_odd, w1, b1, w2, b2,
                                           mxu_dtype=jnp.float32)
    out_odd = jax.block_until_ready(out_odd)
    assert jnp.allclose(out_odd, ref_odd, atol=1e-4, rtol=1e-4), "partial-tile mismatch"

    print("KERNEL_OK")
</pallas_src>

<mosaic_0001>
module attributes {stable_mosaic.version = 11 : i64} {
  func.func @_ffn_kernel_single(%arg0: i32, %arg1: memref<16x32xf32, #tpu.memory_space<vmem>>, %arg2: memref<32x256xbf16, #tpu.memory_space<vmem>>, %arg3: memref<1x256xf32, #tpu.memory_space<vmem>>, %arg4: memref<256x32xbf16, #tpu.memory_space<vmem>>, %arg5: memref<1x32xf32, #tpu.memory_space<vmem>>, %arg6: memref<16x32xf32, #tpu.memory_space<vmem>>) attributes {dimension_semantics = [#tpu.dimension_semantics<parallel>], iteration_bounds = array<i64: 1>, scalar_prefetch = 0 : i64, scratch_operands = 0 : i64, tpu.core_type = #tpu.core_type<tc>, window_params = [{transform_indices = @transform_0, window_bounds = array<i64: 16, 32>}, {pipeline_mode = #tpu.pipeline_mode<synchronous>, transform_indices = @transform_1, window_bounds = array<i64: 32, 256>}, {pipeline_mode = #tpu.pipeline_mode<synchronous>, transform_indices = @transform_2, window_bounds = array<i64: 1, 256>}, {pipeline_mode = #tpu.pipeline_mode<synchronous>, transform_indices = @transform_3, window_bounds = array<i64: 256, 32>}, {pipeline_mode = #tpu.pipeline_mode<synchronous>, transform_indices = @transform_4, window_bounds = array<i64: 1, 32>}, {transform_indices = @transform_5, window_bounds = array<i64: 16, 32>}]} {
    %c0 = arith.constant 0 : index
    %c0_0 = arith.constant 0 : index
    %0 = vector.load %arg1[%c0, %c0_0] : memref<16x32xf32, #tpu.memory_space<vmem>>, vector<16x32xf32>
    %1 = arith.truncf %0 : vector<16x32xf32> to vector<16x32xbf16>
    %c0_1 = arith.constant 0 : index
    %c0_2 = arith.constant 0 : index
    %2 = vector.load %arg2[%c0_1, %c0_2] : memref<32x256xbf16, #tpu.memory_space<vmem>>, vector<32x256xbf16>
    %cst = arith.constant dense<0.000000e+00> : vector<16x256xf32>
    %3 = tpu.matmul %1, %2, %cst {dimension_numbers = #tpu.dot_dimension_numbers<[1], [0], [0], [1], [0, 0, 1, 1], [], []>} : vector<16x32xbf16>, vector<32x256xbf16>, vector<16x256xf32> -> vector<16x256xf32>
    %c0_3 = arith.constant 0 : index
    %c0_4 = arith.constant 0 : index
    %4 = vector.load %arg3[%c0_3, %c0_4] : memref<1x256xf32, #tpu.memory_space<vmem>>, vector<1x256xf32>
    %5 = vector.broadcast %4 : vector<1x256xf32> to vector<16x256xf32>
    %6 = arith.addf %3, %5 : vector<16x256xf32>
    %cst_5 = arith.constant 0.000000e+00 : f32
    %7 = vector.broadcast %cst_5 : f32 to vector<16x256xf32>
    %8 = arith.maximumf %6, %7 : vector<16x256xf32>
    %9 = arith.truncf %8 : vector<16x256xf32> to vector<16x256xbf16>
    %c0_6 = arith.constant 0 : index
    %c0_7 = arith.constant 0 : index
    %10 = vector.load %arg4[%c0_6, %c0_7] : memref<256x32xbf16, #tpu.memory_space<vmem>>, vector<256x32xbf16>
    %cst_8 = arith.constant dense<0.000000e+00> : vector<16x32xf32>
    %11 = tpu.matmul %9, %10, %cst_8 {dimension_numbers = #tpu.dot_dimension_numbers<[1], [0], [0], [1], [0, 0, 1, 1], [], []>} : vector<16x256xbf16>, vector<256x32xbf16>, vector<16x32xf32> -> vector<16x32xf32>
    %c0_9 = arith.constant 0 : index
    %c0_10 = arith.constant 0 : index
    %12 = vector.load %arg5[%c0_9, %c0_10] : memref<1x32xf32, #tpu.memory_space<vmem>>, vector<1x32xf32>
    %13 = vector.broadcast %12 : vector<1x32xf32> to vector<16x32xf32>
    %14 = arith.addf %11, %13 : vector<16x32xf32>
    %c0_11 = arith.constant 0 : index
    %c0_12 = arith.constant 0 : index
    %15 = vector.load %arg6[%c0_11, %c0_12] : memref<16x32xf32, #tpu.memory_space<vmem>>, vector<16x32xf32>
    tpu.vector_store %arg6[%c0_11, %c0_12], %14 {strides = array<i32>} : memref<16x32xf32, #tpu.memory_space<vmem>>, vector<16x32xf32>,
    return
  }
  func.func @transform_0(%arg0: i32) -> (i32, i32) {
    %c0_i32 = arith.constant 0 : i32
    %c0_i32_0 = arith.constant 0 : i32
    return %arg0, %c0_i32 : i32, i32
  }
  func.func @transform_1(%arg0: i32) -> (i32, i32) {
    %c0_i32 = arith.constant 0 : i32
    %c0_i32_0 = arith.constant 0 : i32
    %c0_i32_1 = arith.constant 0 : i32
    return %c0_i32, %c0_i32_0 : i32, i32
  }
  func.func @transform_2(%arg0: i32) -> (i32, i32) {
    %c0_i32 = arith.constant 0 : i32
    %c0_i32_0 = arith.constant 0 : i32
    %c0_i32_1 = arith.constant 0 : i32
    return %c0_i32, %c0_i32_0 : i32, i32
  }
  func.func @transform_3(%arg0: i32) -> (i32, i32) {
    %c0_i32 = arith.constant 0 : i32
    %c0_i32_0 = arith.constant 0 : i32
    %c0_i32_1 = arith.constant 0 : i32
    return %c0_i32, %c0_i32_0 : i32, i32
  }
  func.func @transform_4(%arg0: i32) -> (i32, i32) {
    %c0_i32 = arith.constant 0 : i32
    %c0_i32_0 = arith.constant 0 : i32
    %c0_i32_1 = arith.constant 0 : i32
    return %c0_i32, %c0_i32_0 : i32, i32
  }
  func.func @transform_5(%arg0: i32) -> (i32, i32) {
    %c0_i32 = arith.constant 0 : i32
    %c0_i32_0 = arith.constant 0 : i32
    return %arg0, %c0_i32 : i32, i32
  }
}

</mosaic_0001>

<llo_original>
// kernel: tpu_custom_call.1
$region0: #{tpu_custom_call.1}
  #allocation0 [shape = 'u32[]', space=smem, size = 0x4, offset = 0x4, fixed_abs, tag = 'smem constant byte address 0x4 - core index']
  #allocation1 [shape = 'u32[144,128]{1,0:T(1,128)}', space=vmem, size = 0x12000, scoped, tag = 'internal scratch']
  %s0 = inlined_call_operand.vmem [shape: f32[16,32], index: 0, kind: input, shape index: {}]
  %s1 = inlined_call_operand.vmem [shape: bf16[32,256], index: 1, kind: input, shape index: {}]
  %s2 = inlined_call_operand.vmem [shape: f32[1,256], index: 2, kind: input, shape index: {}]
  %s3 = inlined_call_operand.vmem [shape: bf16[256,32], index: 3, kind: input, shape index: {}]
  %s4 = inlined_call_operand.vmem [shape: f32[1,32], index: 4, kind: input, shape index: {}]
  %s5 = inlined_call_operand.hbm [shape: f32[16,32], index: 5, kind: output, shape index: {}]
  %s6 = sld [smem:[#allocation0]]
  $region30: #{tpu_custom_call.1} parent=0
    _
  %s8 = ssub.s32 1, %s6
  %s9 = scalar_select 0, %s8, %s6
  $region1: #{tpu_custom_call.1} parent=0
    #allocation2 [shape = 'u8[8192]{0}', space=vmem, size = 0x2000, scoped, tag = 'output window, operand 0, single buffered']
    #allocation3 [shape = 's32[1]{0}', space=sflag, size = 0x4, scoped, tag = 'scoped memory for tpu_custom_call.1']
    %10 = vsyncpa [#allocation3], 0
    // Predicated region
    $region2: #{tpu_custom_call.1} parent=1 // pred_check
      _
    $region3: #{tpu_custom_call.1} parent=1 // pred_check_branch
      %12 = sbr.rel (0) target = $region5
    $region4: #{tpu_custom_call.1} parent=1 // pred_region
      _
    $region5: #{tpu_custom_call.1} parent=1 // pred_fallthru
      _
    // Predicated region
    $region6: #{tpu_custom_call.1} parent=1 // pred_check
      _
    $region7: #{tpu_custom_call.1} parent=1 // pred_check_branch
      %14 = sbr.rel (0) target = $region9
    $region8: #{tpu_custom_call.1} parent=1 // pred_region
      _
    $region9: #{tpu_custom_call.1} parent=1 // pred_fallthru
      _
    // Predicated region
    $region10: #{tpu_custom_call.1} parent=1 // pred_check
      _
    $region11: #{tpu_custom_call.1} parent=1 // pred_check_branch
      %16 = sbr.rel (0) target = $region13
    $region12: #{tpu_custom_call.1} parent=1 // pred_region
      _
    $region13: #{tpu_custom_call.1} parent=1 // pred_fallthru
      _
    // Predicated region
    $region14: #{tpu_custom_call.1} parent=1 // pred_check
      _
    $region15: #{tpu_custom_call.1} parent=1 // pred_check_branch
      %18 = sbr.rel (0) target = $region17
    $region16: #{tpu_custom_call.1} parent=1 // pred_region
      _
    $region17: #{tpu_custom_call.1} parent=1 // pred_fallthru
      _
    // Predicated region
    $region18: #{tpu_custom_call.1} parent=1 // pred_check
      _
    $region19: #{tpu_custom_call.1} parent=1 // pred_check_branch
      %20 = sbr.rel (0) target = $region21
    $region20: #{tpu_custom_call.1} parent=1 // pred_region
      _
    $region21: #{tpu_custom_call.1} parent=1 // pred_fallthru
      _
    %v22 = vld [vmem:[%s0] sm:$0xff]
    %v23 = vld [vmem:[%s0 + $0x8] sm:$0xff]
    %v24 = vpack.c.bf16 %v23, %v22
    %v25 = vld [vmem:[%s1] sm:$0xff]
    %v26 = vld [vmem:[%s1 + $0x8] sm:$0xff]
    %v27 = vld [vmem:[%s1 + $0x10] sm:$0xff]
    %v28 = vld [vmem:[%s1 + $0x18] sm:$0xff]
    %v29 = vld [vmem:[%s2] sm:$0x3]
    %v31 = vlaneseq
    %v32 = vshrl.u32 %v31, 7
    %v33 = vsub.s32 0, %v32
    %v34 = vrot.slane %v29, %v33
    %v35 = vlaneseq
    %v36 = vshrl.u32 %v35, 7
    %v37 = vsub.s32 1, %v36
    %v38 = vrot.slane %v29, %v37
    %v45 = vunpack.c.l.b16 %v25
    %v46 = vunpack.c.h.b16 %v25
    %v47 = vunpack.c.l.b16 %v26
    %v48 = vunpack.c.h.b16 %v26
    %v49 = vunpack.c.l.b16 %v27
    %v50 = vunpack.c.h.b16 %v27
    %v51 = vunpack.c.l.b16 %v28
    %v52 = vunpack.c.h.b16 %v28
    %v53 = vpack.c.b16 %v47, %v45
    %v54 = vpack.c.b16 %v48, %v46
    %v55 = vpack.c.b16 %v51, %v49
    %v56 = vpack.c.b16 %v52, %v50
    %vm61 = vcmask 261120
    %v63 = vsel %vm61, %v24, 0
    %65 = vmatprep.subr.bf16.mxu0 %v54
    %66 = vmatpush1.bf16.msra.mxu0 %v53
    %67 = vmatprep.subr.bf16.mxu0 %v56
    %68 = vmatpush1.bf16.msra.mxu0 %v55
    %69 = vmatprep.subr.bf16.mxu0 0
    %70 = vmatpush1.bf16.msra.mxu0 0
    %71 = vmatprep.subr.bf16.mxu0 0
    %72 = vmatpush1.bf16.msra.mxu0 0
    %73 = vmatprep.subr.bf16.mxu0 0
    %74 = vmatpush1.bf16.msra.mxu0 0
    %75 = vmatprep.subr.bf16.mxu0 0
    %76 = vmatpush1.bf16.msra.mxu0 0
    %77 = vmatprep.subr.bf16.mxu0 0
    %78 = vmatpush1.bf16.msra.mxu0 0
    %79 = vmatprep.subr.bf16.mxu0 0
    %80 = vmatpush1.bf16.msra.mxu0 0
    %81 = vmatprep.subr.bf16.mxu0 0
    %82 = vmatpush1.bf16.msra.mxu0 0
    %83 = vmatprep.subr.bf16.mxu0 0
    %84 = vmatpush1.bf16.msra.mxu0 0
    %85 = vmatprep.subr.bf16.mxu0 0
    %86 = vmatpush1.bf16.msra.mxu0 0
    %87 = vmatprep.subr.bf16.mxu0 0
    %88 = vmatpush1.bf16.msra.mxu0 0
    %89 = vmatprep.subr.bf16.mxu0 0
    %90 = vmatpush1.bf16.msra.mxu0 0
    %91 = vmatprep.subr.bf16.mxu0 0
    %92 = vmatpush1.bf16.msra.mxu0 0
    %93 = vmatprep.subr.bf16.mxu0 0
    %94 = vmatpush1.bf16.msra.mxu0 0
    %95 = vmatprep.subr.bf16.mxu0 0
    %96 = vmatpush1.bf16.msra.mxu0 0
    %97 = vmatprep.mubr.bf16.mxu0 0
    %98 = vmatmul.mubr.bf16.gmra.mrb[0].mxu0 %v63
    %v99 = vpop.f32.mrb[0].mxu0
    %v100 = vadd.f32 %v34, %v99
    %v101 = vpop.f32.mrb[0].mxu0
    %v102 = vadd.f32 %v38, %v101
    %v103 = vpop.f32.mrb[0].mxu0
    %v104 = vadd.f32 %v34, %v103
    %v105 = vpop.f32.mrb[0].mxu0
    %v106 = vadd.f32 %v38, %v105
    %107 = vdwg.mxu0
    %v108 = vmax.f32 %v100, 0.0
    %v109 = vmax.f32 %v102, 0.0
    %v110 = vmax.f32 %v104, 0.0
    %v111 = vmax.f32 %v106, 0.0
    %v112 = vpack.c.bf16 %v110, %v108
    %v113 = vpack.c.bf16 %v111, %v109
    %v114 = vld [vmem:[%s3] sm:$0xf]
    %v115 = vld [vmem:[%s3 + $0x4] sm:$0xf]
    %v116 = vld [vmem:[%s3 + $0x8] sm:$0xf]
    %v117 = vld [vmem:[%s3 + $0xc] sm:$0xf]
    %v118 = vld [vmem:[%s3 + $0x10] sm:$0xf]
    %v119 = vld [vmem:[%s3 + $0x14] sm:$0xf]
    %v120 = vld [vmem:[%s3 + $0x18] sm:$0xf]
    %v121 = vld [vmem:[%s3 + $0x1c] sm:$0xf]
    %v122 = vld [vmem:[%s3 + $0x20] sm:$0xf]
    %v123 = vld [vmem:[%s3 + $0x24] sm:$0xf]
    %v124 = vld [vmem:[%s3 + $0x28] sm:$0xf]
    %v125 = vld [vmem:[%s3 + $0x2c] sm:$0xf]
    %v126 = vld [vmem:[%s3 + $0x30] sm:$0xf]
    %v127 = vld [vmem:[%s3 + $0x34] sm:$0xf]
    %v128 = vld [vmem:[%s3 + $0x38] sm:$0xf]
    %v129 = vld [vmem:[%s3 + $0x3c] sm:$0xf]
    %v130 = vld [vmem:[%s3 + $0x40] sm:$0xf]
    %v131 = vld [vmem:[%s3 + $0x44] sm:$0xf]
    %v132 = vld [vmem:[%s3 + $0x48] sm:$0xf]
    %v133 = vld [vmem:[%s3 + $0x4c] sm:$0xf]
    %v134 = vld [vmem:[%s3 + $0x50] sm:$0xf]
    %v135 = vld [vmem:[%s3 + $0x54] sm:$0xf]
    %v136 = vld [vmem:[%s3 + $0x58] sm:$0xf]
    %v137 = vld [vmem:[%s3 + $0x5c] sm:$0xf]
    %v138 = vld [vmem:[%s3 + $0x60] sm:$0xf]
    %v139 = vld [vmem:[%s3 + $0x64] sm:$0xf]
    %v140 = vld [vmem:[%s3 + $0x68] sm:$0xf]
    %v141 = vld [vmem:[%s3 + $0x6c] sm:$0xf]
    %v142 = vld [vmem:[%s3 + $0x70] sm:$0xf]
    %v143 = vld [vmem:[%s3 + $0x74] sm:$0xf]
    %v144 = vld [vmem:[%s3 + $0x78] sm:$0xf]
    %v145 = vld [vmem:[%s3 + $0x7c] sm:$0xf]
    %v146 = vld [vmem:[%s4] sm:$0x1]
    %v148 = vlaneseq
    %v149 = vshrl.u32 %v148, 7
    %v150 = vsub.s32 0, %v149
    %v151 = vrot.slane %v146, %v150
    %v185 = vunpack.c.l.b16 %v114
    %v186 = vunpack.c.l.b16 %v115
    %v187 = vunpack.c.l.b16 %v116
    %v188 = vunpack.c.l.b16 %v117
    %v189 = vunpack.c.l.b16 %v118
    %v190 = vunpack.c.l.b16 %v119
    %v191 = vunpack.c.l.b16 %v120
    %v192 = vunpack.c.l.b16 %v121
    %v193 = vunpack.c.l.b16 %v122
    %v194 = vunpack.c.l.b16 %v123
    %v195 = vunpack.c.l.b16 %v124
    %v196 = vunpack.c.l.b16 %v125
    %v197 = vunpack.c.l.b16 %v126
    %v198 = vunpack.c.l.b16 %v127
    %v199 = vunpack.c.l.b16 %v128
    %v200 = vunpack.c.l.b16 %v129
    %v201 = vunpack.c.l.b16 %v130
    %v202 = vunpack.c.l.b16 %v131
    %v203 = vunpack.c.l.b16 %v132
    %v204 = vunpack.c.l.b16 %v133
    %v205 = vunpack.c.l.b16 %v134
    %v206 = vunpack.c.l.b16 %v135
    %v207 = vunpack.c.l.b16 %v136
    %v208 = vunpack.c.l.b16 %v137
    %v209 = vunpack.c.l.b16 %v138
    %v210 = vunpack.c.l.b16 %v139
    %v211 = vunpack.c.l.b16 %v140
    %v212 = vunpack.c.l.b16 %v141
    %v213 = vunpack.c.l.b16 %v142
    %v214 = vunpack.c.l.b16 %v143
    %v215 = vunpack.c.l.b16 %v144
    %v216 = vunpack.c.l.b16 %v145
    %v217 = vpack.c.b16 %v186, %v185
    %v218 = vpack.c.b16 %v188, %v187
    %v219 = vpack.c.b16 %v190, %v189
    %v220 = vpack.c.b16 %v192, %v191
    %v221 = vpack.c.b16 %v194, %v193
    %v222 = vpack.c.b16 %v196, %v195
    %v223 = vpack.c.b16 %v198, %v197
    %v224 = vpack.c.b16 %v200, %v199
    %v225 = vpack.c.b16 %v202, %v201
    %v226 = vpack.c.b16 %v204, %v203
    %v227 = vpack.c.b16 %v206, %v205
    %v228 = vpack.c.b16 %v208, %v207
    %v229 = vpack.c.b16 %v210, %v209
    %v230 = vpack.c.b16 %v212, %v211
    %v231 = vpack.c.b16 %v214, %v213
    %v232 = vpack.c.b16 %v216, %v215
    %249 = vmatprep.subr.bf16.mxu0 0
    %250 = vmatpush1.bf16.msra.mxu0 %v217
    %251 = vmatprep.subr.bf16.mxu0 0
    %252 = vmatpush1.bf16.msra.mxu0 %v218
    %253 = vmatprep.subr.bf16.mxu0 0
    %254 = vmatpush1.bf16.msra.mxu0 %v219
    %255 = vmatprep.subr.bf16.mxu0 0
    %256 = vmatpush1.bf16.msra.mxu0 %v220
    %257 = vmatprep.subr.bf16.mxu0 0
    %258 = vmatpush1.bf16.msra.mxu0 %v221
    %259 = vmatprep.subr.bf16.mxu0 0
    %260 = vmatpush1.bf16.msra.mxu0 %v222
    %261 = vmatprep.subr.bf16.mxu0 0
    %262 = vmatpush1.bf16.msra.mxu0 %v223
    %263 = vmatprep.subr.bf16.mxu0 0
    %264 = vmatpush1.bf16.msra.mxu0 %v224
    %265 = vmatprep.subr.bf16.mxu0 0
    %266 = vmatpush1.bf16.msra.mxu0 %v225
    %267 = vmatprep.subr.bf16.mxu0 0
    %268 = vmatpush1.bf16.msra.mxu0 %v226
    %269 = vmatprep.subr.bf16.mxu0 0
    %270 = vmatpush1.bf16.msra.mxu0 %v227
    %271 = vmatprep.subr.bf16.mxu0 0
    %272 = vmatpush1.bf16.msra.mxu0 %v228
    %273 = vmatprep.subr.bf16.mxu0 0
    %274 = vmatpush1.bf16.msra.mxu0 %v229
    %275 = vmatprep.subr.bf16.mxu0 0
    %276 = vmatpush1.bf16.msra.mxu0 %v230
    %277 = vmatprep.subr.bf16.mxu0 0
    %278 = vmatpush1.bf16.msra.mxu0 %v231
    %279 = vmatprep.subr.bf16.mxu0 0
    %280 = vmatpush1.bf16.msra.mxu0 %v232
    %281 = vmatprep.mubr.bf16.mxu0 %v113
    %282 = vmatmul.mubr.bf16.gmra.mrb[0].mxu0 %v112
    %v283 = vpop.f32.mrb[0].mxu0
    %v284 = vadd.f32 %v151, %v283
    %v285 = vpop.f32.mrb[0].mxu0
    %v286 = vpop.f32.mrb[0].mxu0
    %v287 = vadd.f32 %v151, %v286
    %v288 = vpop.f32.mrb[0].mxu0
    %289 = vdwg.mxu0
    %290 = vst.msk [vmem:[#allocation2] sm:$0xff] %vm61, %v284
    %291 = vst.msk [vmem:[#allocation2 + $0x8] sm:$0xff] %vm61, %v287
    // Predicated region
    $region22: #{tpu_custom_call.1} parent=1 // pred_check
      _
    $region23: #{tpu_custom_call.1} parent=1 // pred_check_branch
      %293 = sbr.rel (0) target = $region25
    $region24: #{tpu_custom_call.1} parent=1 // pred_region
      %s295 = ssub.s32 256, 256
      %296 = vsyncadd [#allocation3], %s295
      %s297 = sshll.u32 [#allocation2], 4
      %s298 = int_to_ptr.vmem [resolvable:$true] %s297
      %303 = dma.vmem_to_hbm [thread:$0]  %s298, 256, %s5, [#allocation3], 128, 128, 8
    $region25: #{tpu_custom_call.1} parent=1 // pred_fallthru
      _
    // Predicated region
    $region26: #{tpu_custom_call.1} parent=1 // pred_check
      _
    $region27: #{tpu_custom_call.1} parent=1 // pred_check_branch
      %305 = sbr.rel (0) target = $region29
    $region28: #{tpu_custom_call.1} parent=1 // pred_region
      %306 = dma.done [#allocation3], 256
    $region29: #{tpu_custom_call.1} parent=1 // pred_fallthru
      _
    %307 = vsyncpa [#allocation3], 1

</llo_original>
